<compile_context>
chip_gen: v5e
topology: v5e:2x2
jax: 0.10.0
libtpu: 0.0.40
codegen_flags: <defaults>
</compile_context>

<pallas_src>
import functools

import jax
import jax.numpy as jnp
from jax.experimental import pallas as pl
from jax.experimental.pallas import tpu as pltpu


def _round_up(x, m):
    return ((x + m - 1) // m) * m


def _layernorm(x, gamma, beta, eps=1e-5):
    mu = jnp.mean(x, axis=-1, keepdims=True)
    var = jnp.mean((x - mu) ** 2, axis=-1, keepdims=True)  # biased, like torch
    return (x - mu) * jax.lax.rsqrt(var + eps) * gamma + beta


def simple_rwkv_kernel(x_ref, w_emb_ref, vecs_ref, w_fused_ref,
                       w_cls_ref, b_cls_ref, out_ref, *, num_layers, hidden_dim):
    x = x_ref[...]                                    # (TB, input_dim)
    b_emb = vecs_ref[0:1, :]                          # (1, H)
    gamma = vecs_ref[1:2, :]
    beta = vecs_ref[2:3, :]

    # embedding Linear
    h = jnp.dot(x, w_emb_ref[...], preferred_element_type=jnp.float32) + b_emb

    for l in range(num_layers):                       # unrolled at trace time
        wf = w_fused_ref[l]                           # (H, 2H) = [Wvo | Wr']
        fused = jnp.dot(h, wf, preferred_element_type=jnp.float32)   # (TB, 2H)
        blk_pre = fused[:, :hidden_dim]               # Wo(Wv(x*mix_v))
        r = jax.nn.sigmoid(fused[:, hidden_dim:])     # sigmoid(Wr(x*mix_r))
        h = h + r * blk_pre                           # residual + block output
        h = _layernorm(h, gamma, beta)
        # dropout(p=0.2): identity at inference

    # lane-dense (128-wide, zero-padded) classifier output
    out_ref[...] = (jnp.dot(h, w_cls_ref[...], preferred_element_type=jnp.float32)
                    + b_cls_ref[...])


def pack_params(params, num_classes_padded=128):
    """One-time precompute: fold mixes into weights, fuse Wv@Wo, pad classifier."""
    H = params["w_emb"].shape[1]
    nc = params["w_cls"].shape[1]

    fused = []
    for lp in params["layers"]:
        wv_p = lp["mix_v"].T * lp["wv"]               # diag(mix_v) @ Wv   (H,H)
        wvo = wv_p @ lp["wo"]                         # fused value->output (H,H)
        wr_p = lp["mix_r"].T * lp["wr"]               # diag(mix_r) @ Wr   (H,H)
        fused.append(jnp.concatenate([wvo, wr_p], axis=1))          # (H, 2H)
    w_fused = jnp.stack(fused, axis=0)                               # (L, H, 2H)

    vecs = jnp.concatenate([params["b_emb"], params["gamma"], params["beta"]],
                           axis=0)                                   # (3, H)

    w_cls_pad = jnp.zeros((H, num_classes_padded), jnp.float32)
    w_cls_pad = w_cls_pad.at[:, :nc].set(params["w_cls"])
    b_cls_pad = jnp.zeros((1, num_classes_padded), jnp.float32)
    b_cls_pad = b_cls_pad.at[:, :nc].set(params["b_cls"])

    return {"w_emb": params["w_emb"], "vecs": vecs, "w_fused": w_fused,
            "w_cls_pad": w_cls_pad, "b_cls_pad": b_cls_pad,
            "hidden_dim": H, "num_layers": len(params["layers"]),
            "num_classes": nc}


def simple_rwkv_forward(x, packed):
    """x: (B, input_dim) float32 -> (B, num_classes) float32."""
    B, input_dim = x.shape
    H = packed["hidden_dim"]
    L = packed["num_layers"]
    NC = packed["num_classes"]
    NCP = packed["w_cls_pad"].shape[1]

    # batch grid: large row tiles, padded to a multiple of the tile size
    TB = min(512, _round_up(B, 8))
    B_pad = _round_up(B, TB)
    if B_pad != B:
        x = jnp.pad(x, ((0, B_pad - B), (0, 0)))
    grid = (B_pad // TB,)

    kernel = functools.partial(simple_rwkv_kernel, num_layers=L, hidden_dim=H)

    flops = (2 * B_pad * input_dim * H                # embedding
             + L * (2 * B_pad * H * (2 * H)           # fused per-layer matmul
                    + 12 * B_pad * H)                 # elementwise + layernorm
             + 2 * B_pad * H * NCP)                   # classifier
    transcendentals = L * B_pad * H                   # sigmoid
    bytes_accessed = 4 * (int(x.size) + int(packed["w_emb"].size)
                          + int(packed["vecs"].size) + int(packed["w_fused"].size)
                          + int(packed["w_cls_pad"].size)
                          + int(packed["b_cls_pad"].size) + B_pad * NCP)
    cost = pl.CostEstimate(flops=flops, transcendentals=transcendentals,
                           bytes_accessed=bytes_accessed)

    out = pl.pallas_call(
        kernel,
        out_shape=jax.ShapeDtypeStruct((B_pad, NCP), jnp.float32),
        grid=grid,
        in_specs=[
            pl.BlockSpec((TB, input_dim), lambda i: (i, 0)),           # x tile
            pl.BlockSpec(packed["w_emb"].shape, lambda i: (0, 0)),     # resident
            pl.BlockSpec(packed["vecs"].shape, lambda i: (0, 0)),
            pl.BlockSpec(packed["w_fused"].shape, lambda i: (0, 0, 0)),
            pl.BlockSpec(packed["w_cls_pad"].shape, lambda i: (0, 0)),
            pl.BlockSpec(packed["b_cls_pad"].shape, lambda i: (0, 0)),
        ],
        out_specs=pl.BlockSpec((TB, NCP), lambda i: (i, 0)),
        compiler_params=pltpu.CompilerParams(
            dimension_semantics=("parallel",)),       # shards batch on v7x 2 TCs
        cost_estimate=cost,
    )(x, packed["w_emb"], packed["vecs"], packed["w_fused"],
      packed["w_cls_pad"], packed["b_cls_pad"])

    return out[:B, :NC]


def init_params(key, input_dim, hidden_dim, num_classes, num_layers=2):
    """Deterministic synthetic parameters matching the PyTorch module shapes."""
    def linear_w(k, fan_in, fan_out):
        # torch Linear init: U(-1/sqrt(fan_in), 1/sqrt(fan_in)); stored transposed.
        bound = 1.0 / jnp.sqrt(jnp.float32(fan_in))
        return jax.random.uniform(k, (fan_in, fan_out), jnp.float32, -bound, bound)

    keys = iter(jax.random.split(key, 4 + num_layers * 5))
    params = {
        "w_emb": linear_w(next(keys), input_dim, hidden_dim),
        "b_emb": jax.random.uniform(next(keys), (1, hidden_dim), jnp.float32,
                                    -1.0 / jnp.sqrt(jnp.float32(input_dim)),
                                    1.0 / jnp.sqrt(jnp.float32(input_dim))),
        "gamma": jnp.ones((1, hidden_dim), jnp.float32),
        "beta": jnp.zeros((1, hidden_dim), jnp.float32),
        "w_cls": linear_w(next(keys), hidden_dim, num_classes),
        "b_cls": jax.random.uniform(next(keys), (1, num_classes), jnp.float32,
                                    -1.0 / jnp.sqrt(jnp.float32(hidden_dim)),
                                    1.0 / jnp.sqrt(jnp.float32(hidden_dim))),
        "layers": [],
    }
    for _ in range(num_layers):
        lkeys = jax.random.split(next(keys), 5)
        params["layers"].append({
            # time_decay / mix_k / wk exist in the module but cannot affect a
            # seq_len==1 output; kept here for shape fidelity, never DMA'd.
            "time_decay": jax.random.normal(lkeys[0], (1, hidden_dim)) * 0.01,
            "mix_k": jnp.full((1, hidden_dim), 0.5, jnp.float32),
            "mix_v": jnp.full((1, hidden_dim), 0.5, jnp.float32),
            "mix_r": jnp.full((1, hidden_dim), 0.5, jnp.float32),
            "wk": linear_w(lkeys[1], hidden_dim, hidden_dim),
            "wv": linear_w(lkeys[2], hidden_dim, hidden_dim),
            "wr": linear_w(lkeys[3], hidden_dim, hidden_dim),
            "wo": linear_w(lkeys[4], hidden_dim, hidden_dim),
        })
    return params


def simple_rwkv_reference(x, params):
    """Pure-JAX reference mirroring the PyTorch forward (eval mode, unfused)."""
    h = x @ params["w_emb"] + params["b_emb"]
    for lp in params["layers"]:
        residual = h
        v = (h * lp["mix_v"]) @ lp["wv"]
        r = jax.nn.sigmoid((h * lp["mix_r"]) @ lp["wr"])
        h = residual + r * (v @ lp["wo"])
        h = _layernorm(h, params["gamma"], params["beta"])
    return h @ params["w_cls"] + params["b_cls"]


if __name__ == "__main__":
    input_dim, hidden_dim, num_classes, num_layers = 16, 32, 4, 2
    batch = 8

    key = jax.random.PRNGKey(0)
    kx, kp = jax.random.split(key)
    x = jax.random.normal(kx, (batch, input_dim), jnp.float32)
    params = init_params(kp, input_dim, hidden_dim, num_classes, num_layers)
    packed = pack_params(params)

    out = simple_rwkv_forward(x, packed)
    jax.block_until_ready(out)

    ref = simple_rwkv_reference(x, params)
    assert out.shape == (batch, num_classes)
    assert jnp.allclose(out, ref, atol=1e-4, rtol=1e-4)

    print("KERNEL_OK")
</pallas_src>

<mosaic_0001>
module attributes {stable_mosaic.version = 11 : i64} {
  func.func @simple_rwkv_kernel(%arg0: i32, %arg1: memref<8x16xf32, #tpu.memory_space<vmem>>, %arg2: memref<16x32xf32, #tpu.memory_space<vmem>>, %arg3: memref<3x32xf32, #tpu.memory_space<vmem>>, %arg4: memref<2x32x64xf32, #tpu.memory_space<vmem>>, %arg5: memref<32x128xf32, #tpu.memory_space<vmem>>, %arg6: memref<1x128xf32, #tpu.memory_space<vmem>>, %arg7: memref<8x128xf32, #tpu.memory_space<vmem>>) attributes {dimension_semantics = [#tpu.dimension_semantics<parallel>], iteration_bounds = array<i64: 1>, scalar_prefetch = 0 : i64, scratch_operands = 0 : i64, tpu.core_type = #tpu.core_type<tc>, window_params = [{transform_indices = @transform_0, window_bounds = array<i64: 8, 16>}, {pipeline_mode = #tpu.pipeline_mode<synchronous>, transform_indices = @transform_1, window_bounds = array<i64: 16, 32>}, {pipeline_mode = #tpu.pipeline_mode<synchronous>, transform_indices = @transform_2, window_bounds = array<i64: 3, 32>}, {pipeline_mode = #tpu.pipeline_mode<synchronous>, transform_indices = @transform_3, window_bounds = array<i64: 2, 32, 64>}, {pipeline_mode = #tpu.pipeline_mode<synchronous>, transform_indices = @transform_4, window_bounds = array<i64: 32, 128>}, {pipeline_mode = #tpu.pipeline_mode<synchronous>, transform_indices = @transform_5, window_bounds = array<i64: 1, 128>}, {transform_indices = @transform_6, window_bounds = array<i64: 8, 128>}]} {
    %c0 = arith.constant 0 : index
    %c0_0 = arith.constant 0 : index
    %0 = vector.load %arg1[%c0, %c0_0] : memref<8x16xf32, #tpu.memory_space<vmem>>, vector<8x16xf32>
    %c0_1 = arith.constant 0 : index
    %c0_2 = arith.constant 0 : index
    %1 = vector.load %arg3[%c0_1, %c0_2] : memref<3x32xf32, #tpu.memory_space<vmem>>, vector<1x32xf32>
    %c1 = arith.constant 1 : index
    %c0_3 = arith.constant 0 : index
    %2 = vector.load %arg3[%c1, %c0_3] : memref<3x32xf32, #tpu.memory_space<vmem>>, vector<1x32xf32>
    %c2 = arith.constant 2 : index
    %c0_4 = arith.constant 0 : index
    %3 = vector.load %arg3[%c2, %c0_4] : memref<3x32xf32, #tpu.memory_space<vmem>>, vector<1x32xf32>
    %c0_5 = arith.constant 0 : index
    %c0_6 = arith.constant 0 : index
    %4 = vector.load %arg2[%c0_5, %c0_6] : memref<16x32xf32, #tpu.memory_space<vmem>>, vector<16x32xf32>
    %cst = arith.constant dense<0.000000e+00> : vector<8x32xf32>
    %5 = tpu.matmul %0, %4, %cst {dimension_numbers = #tpu.dot_dimension_numbers<[1], [0], [0], [1], [0, 0, 1, 1], [], []>} : vector<8x16xf32>, vector<16x32xf32>, vector<8x32xf32> -> vector<8x32xf32>
    %6 = vector.broadcast %1 : vector<1x32xf32> to vector<8x32xf32>
    %7 = arith.addf %5, %6 : vector<8x32xf32>
    %c0_7 = arith.constant 0 : index
    %c0_8 = arith.constant 0 : index
    %c0_9 = arith.constant 0 : index
    %8 = vector.load %arg4[%c0_7, %c0_8, %c0_9] : memref<2x32x64xf32, #tpu.memory_space<vmem>>, vector<1x32x64xf32>
    %9 = vector.shape_cast %8 : vector<1x32x64xf32> to vector<32x64xf32>
    %cst_10 = arith.constant dense<0.000000e+00> : vector<8x64xf32>
    %10 = tpu.matmul %7, %9, %cst_10 {dimension_numbers = #tpu.dot_dimension_numbers<[1], [0], [0], [1], [0, 0, 1, 1], [], []>} : vector<8x32xf32>, vector<32x64xf32>, vector<8x64xf32> -> vector<8x64xf32>
    %11 = vector.extract_strided_slice %10 {offsets = [0, 0], sizes = [8, 32], strides = [1, 1]} : vector<8x64xf32> to vector<8x32xf32>
    %12 = vector.extract_strided_slice %10 {offsets = [0, 32], sizes = [8, 32], strides = [1, 1]} : vector<8x64xf32> to vector<8x32xf32>
    %13 = arith.negf %12 : vector<8x32xf32>
    %14 = math.exp %13 : vector<8x32xf32>
    %cst_11 = arith.constant 1.000000e+00 : f32
    %15 = vector.broadcast %cst_11 : f32 to vector<8x32xf32>
    %16 = arith.addf %15, %14 : vector<8x32xf32>
    %17 = arith.divf %15, %16 : vector<8x32xf32>
    %18 = arith.mulf %17, %11 : vector<8x32xf32>
    %19 = arith.addf %7, %18 : vector<8x32xf32>
    %cst_12 = arith.constant dense<0.000000e+00> : vector<8xf32>
    %20 = vector.multi_reduction <add>, %19, %cst_12 [1] : vector<8x32xf32> to vector<8xf32>
    %21 = vector.shape_cast %20 : vector<8xf32> to vector<8x1xf32>
    %cst_13 = arith.constant 3.200000e+01 : f32
    %22 = vector.broadcast %cst_13 : f32 to vector<8x1xf32>
    %23 = arith.divf %21, %22 : vector<8x1xf32>
    %24 = vector.broadcast %23 : vector<8x1xf32> to vector<8x32xf32>
    %25 = arith.subf %19, %24 : vector<8x32xf32>
    %26 = arith.mulf %25, %25 : vector<8x32xf32>
    %cst_14 = arith.constant dense<0.000000e+00> : vector<8xf32>
    %27 = vector.multi_reduction <add>, %26, %cst_14 [1] : vector<8x32xf32> to vector<8xf32>
    %28 = vector.shape_cast %27 : vector<8xf32> to vector<8x1xf32>
    %cst_15 = arith.constant 3.200000e+01 : f32
    %29 = vector.broadcast %cst_15 : f32 to vector<8x1xf32>
    %30 = arith.divf %28, %29 : vector<8x1xf32>
    %31 = vector.broadcast %23 : vector<8x1xf32> to vector<8x32xf32>
    %32 = arith.subf %19, %31 : vector<8x32xf32>
    %cst_16 = arith.constant 9.99999974E-6 : f32
    %33 = vector.broadcast %cst_16 : f32 to vector<8x1xf32>
    %34 = arith.addf %30, %33 : vector<8x1xf32>
    %35 = math.rsqrt %34 : vector<8x1xf32>
    %36 = vector.broadcast %35 : vector<8x1xf32> to vector<8x32xf32>
    %37 = arith.mulf %32, %36 : vector<8x32xf32>
    %38 = vector.broadcast %2 : vector<1x32xf32> to vector<8x32xf32>
    %39 = arith.mulf %37, %38 : vector<8x32xf32>
    %40 = vector.broadcast %3 : vector<1x32xf32> to vector<8x32xf32>
    %41 = arith.addf %39, %40 : vector<8x32xf32>
    %c1_17 = arith.constant 1 : index
    %c0_18 = arith.constant 0 : index
    %c0_19 = arith.constant 0 : index
    %42 = vector.load %arg4[%c1_17, %c0_18, %c0_19] : memref<2x32x64xf32, #tpu.memory_space<vmem>>, vector<1x32x64xf32>
    %43 = vector.shape_cast %42 : vector<1x32x64xf32> to vector<32x64xf32>
    %cst_20 = arith.constant dense<0.000000e+00> : vector<8x64xf32>
    %44 = tpu.matmul %41, %43, %cst_20 {dimension_numbers = #tpu.dot_dimension_numbers<[1], [0], [0], [1], [0, 0, 1, 1], [], []>} : vector<8x32xf32>, vector<32x64xf32>, vector<8x64xf32> -> vector<8x64xf32>
    %45 = vector.extract_strided_slice %44 {offsets = [0, 0], sizes = [8, 32], strides = [1, 1]} : vector<8x64xf32> to vector<8x32xf32>
    %46 = vector.extract_strided_slice %44 {offsets = [0, 32], sizes = [8, 32], strides = [1, 1]} : vector<8x64xf32> to vector<8x32xf32>
    %47 = arith.negf %46 : vector<8x32xf32>
    %48 = math.exp %47 : vector<8x32xf32>
    %cst_21 = arith.constant 1.000000e+00 : f32
    %49 = vector.broadcast %cst_21 : f32 to vector<8x32xf32>
    %50 = arith.addf %49, %48 : vector<8x32xf32>
    %51 = arith.divf %49, %50 : vector<8x32xf32>
    %52 = arith.mulf %51, %45 : vector<8x32xf32>
    %53 = arith.addf %41, %52 : vector<8x32xf32>
    %cst_22 = arith.constant dense<0.000000e+00> : vector<8xf32>
    %54 = vector.multi_reduction <add>, %53, %cst_22 [1] : vector<8x32xf32> to vector<8xf32>
    %55 = vector.shape_cast %54 : vector<8xf32> to vector<8x1xf32>
    %cst_23 = arith.constant 3.200000e+01 : f32
    %56 = vector.broadcast %cst_23 : f32 to vector<8x1xf32>
    %57 = arith.divf %55, %56 : vector<8x1xf32>
    %58 = vector.broadcast %57 : vector<8x1xf32> to vector<8x32xf32>
    %59 = arith.subf %53, %58 : vector<8x32xf32>
    %60 = arith.mulf %59, %59 : vector<8x32xf32>
    %cst_24 = arith.constant dense<0.000000e+00> : vector<8xf32>
    %61 = vector.multi_reduction <add>, %60, %cst_24 [1] : vector<8x32xf32> to vector<8xf32>
    %62 = vector.shape_cast %61 : vector<8xf32> to vector<8x1xf32>
    %cst_25 = arith.constant 3.200000e+01 : f32
    %63 = vector.broadcast %cst_25 : f32 to vector<8x1xf32>
    %64 = arith.divf %62, %63 : vector<8x1xf32>
    %65 = vector.broadcast %57 : vector<8x1xf32> to vector<8x32xf32>
    %66 = arith.subf %53, %65 : vector<8x32xf32>
    %cst_26 = arith.constant 9.99999974E-6 : f32
    %67 = vector.broadcast %cst_26 : f32 to vector<8x1xf32>
    %68 = arith.addf %64, %67 : vector<8x1xf32>
    %69 = math.rsqrt %68 : vector<8x1xf32>
    %70 = vector.broadcast %69 : vector<8x1xf32> to vector<8x32xf32>
    %71 = arith.mulf %66, %70 : vector<8x32xf32>
    %72 = vector.broadcast %2 : vector<1x32xf32> to vector<8x32xf32>
    %73 = arith.mulf %71, %72 : vector<8x32xf32>
    %74 = vector.broadcast %3 : vector<1x32xf32> to vector<8x32xf32>
    %75 = arith.addf %73, %74 : vector<8x32xf32>
    %c0_27 = arith.constant 0 : index
    %c0_28 = arith.constant 0 : index
    %76 = vector.load %arg5[%c0_27, %c0_28] : memref<32x128xf32, #tpu.memory_space<vmem>>, vector<32x128xf32>
    %cst_29 = arith.constant dense<0.000000e+00> : vector<8x128xf32>
    %77 = tpu.matmul %75, %76, %cst_29 {dimension_numbers = #tpu.dot_dimension_numbers<[1], [0], [0], [1], [0, 0, 1, 1], [], []>} : vector<8x32xf32>, vector<32x128xf32>, vector<8x128xf32> -> vector<8x128xf32>
    %c0_30 = arith.constant 0 : index
    %c0_31 = arith.constant 0 : index
    %78 = vector.load %arg6[%c0_30, %c0_31] : memref<1x128xf32, #tpu.memory_space<vmem>>, vector<1x128xf32>
    %79 = vector.broadcast %78 : vector<1x128xf32> to vector<8x128xf32>
    %80 = arith.addf %77, %79 : vector<8x128xf32>
    %c0_32 = arith.constant 0 : index
    %c0_33 = arith.constant 0 : index
    %81 = vector.load %arg7[%c0_32, %c0_33] : memref<8x128xf32, #tpu.memory_space<vmem>>, vector<8x128xf32>
    tpu.vector_store %arg7[%c0_32, %c0_33], %80 {strides = array<i32>} : memref<8x128xf32, #tpu.memory_space<vmem>>, vector<8x128xf32>,
    return
  }
  func.func @transform_0(%arg0: i32) -> (i32, i32) {
    %c0_i32 = arith.constant 0 : i32
    %c0_i32_0 = arith.constant 0 : i32
    return %arg0, %c0_i32 : i32, i32
  }
  func.func @transform_1(%arg0: i32) -> (i32, i32) {
    %c0_i32 = arith.constant 0 : i32
    %c0_i32_0 = arith.constant 0 : i32
    %c0_i32_1 = arith.constant 0 : i32
    return %c0_i32, %c0_i32_0 : i32, i32
  }
  func.func @transform_2(%arg0: i32) -> (i32, i32) {
    %c0_i32 = arith.constant 0 : i32
    %c0_i32_0 = arith.constant 0 : i32
    %c0_i32_1 = arith.constant 0 : i32
    return %c0_i32, %c0_i32_0 : i32, i32
  }
  func.func @transform_3(%arg0: i32) -> (i32, i32, i32) {
    %c0_i32 = arith.constant 0 : i32
    %c0_i32_0 = arith.constant 0 : i32
    %c0_i32_1 = arith.constant 0 : i32
    %c0_i32_2 = arith.constant 0 : i32
    return %c0_i32, %c0_i32_0, %c0_i32_1 : i32, i32, i32
  }
  func.func @transform_4(%arg0: i32) -> (i32, i32) {
    %c0_i32 = arith.constant 0 : i32
    %c0_i32_0 = arith.constant 0 : i32
    %c0_i32_1 = arith.constant 0 : i32
    return %c0_i32, %c0_i32_0 : i32, i32
  }
  func.func @transform_5(%arg0: i32) -> (i32, i32) {
    %c0_i32 = arith.constant 0 : i32
    %c0_i32_0 = arith.constant 0 : i32
    %c0_i32_1 = arith.constant 0 : i32
    return %c0_i32, %c0_i32_0 : i32, i32
  }
  func.func @transform_6(%arg0: i32) -> (i32, i32) {
    %c0_i32 = arith.constant 0 : i32
    %c0_i32_0 = arith.constant 0 : i32
    return %arg0, %c0_i32 : i32, i32
  }
}

</mosaic_0001>

<llo_original>
// kernel: tpu_custom_call.1
$region0: #{tpu_custom_call.1}
  #allocation0 [shape = 'u32[]', space=smem, size = 0x4, offset = 0x4, fixed_abs, tag = 'smem constant byte address 0x4 - core index']
  #allocation1 [shape = 'u32[72,128]{1,0:T(1,128)}', space=vmem, size = 0x9000, scoped, tag = 'internal scratch']
  %s0 = inlined_call_operand.hbm [shape: f32[8,16], index: 0, kind: input, shape index: {}]
  %s1 = inlined_call_operand.hbm [shape: f32[16,32], index: 1, kind: input, shape index: {}]
  %s2 = inlined_call_operand.hbm [shape: f32[3,32], index: 2, kind: input, shape index: {}]
  %s3 = inlined_call_operand.hbm [shape: f32[2,32,64], index: 3, kind: input, shape index: {}]
  %s4 = inlined_call_operand.hbm [shape: f32[32,128], index: 4, kind: input, shape index: {}]
  %s5 = inlined_call_operand.vmem [shape: f32[1,128], index: 5, kind: input, shape index: {}]
  %s6 = inlined_call_operand.hbm [shape: f32[8,128], index: 6, kind: output, shape index: {}]
  %s7 = sld [smem:[#allocation0]]
  $region54: #{tpu_custom_call.1} parent=0
    _
  %s9 = ssub.s32 1, %s7
  %s10 = scalar_select 0, %s9, %s7
  $region1: #{tpu_custom_call.1} parent=0
    #allocation2 [shape = 'u8[4096]{0}', space=vmem, size = 0x1000, scoped, tag = 'input window, operand 0, single buffered']
    #allocation3 [shape = 's32[1]{0}', space=sflag, size = 0x4, scoped, tag = 'scoped memory for tpu_custom_call.1']
    #allocation4 [shape = 's32[1]{0}', space=sflag, size = 0x4, scoped, tag = 'scoped memory for tpu_custom_call.1']
    #allocation5 [shape = 'u8[8192]{0}', space=vmem, size = 0x2000, scoped, tag = 'input window, operand 1, single buffered']
    #allocation6 [shape = 's32[1]{0}', space=sflag, size = 0x4, scoped, tag = 'scoped memory for tpu_custom_call.1']
    #allocation7 [shape = 'u8[2048]{0}', space=vmem, size = 0x800, scoped, tag = 'input window, operand 2, single buffered']
    #allocation8 [shape = 'u8[32768]{0}', space=vmem, size = 0x8000, scoped, tag = 'input window, operand 3, single buffered']
    #allocation9 [shape = 's32[1]{0}', space=sflag, size = 0x4, scoped, tag = 'scoped memory for tpu_custom_call.1']
    #allocation10 [shape = 'u8[16384]{0}', space=vmem, size = 0x4000, scoped, tag = 'input window, operand 4, single buffered']
    #allocation11 [shape = 'u8[4096]{0}', space=vmem, size = 0x1000, scoped, tag = 'output window, operand 0, single buffered']
    %11 = vsyncpa [#allocation3], 0
    %12 = vsyncpa [#allocation6], 0
    %13 = vsyncpa [#allocation9], 0
    %14 = vsyncpa [#allocation4], 0
    // Predicated region
    $region2: #{tpu_custom_call.1} parent=1 // pred_check
      _
    $region3: #{tpu_custom_call.1} parent=1 // pred_check_branch
      %16 = sbr.rel (0) target = $region5
    $region4: #{tpu_custom_call.1} parent=1 // pred_region
      %18 = vsyncadd [#allocation3], 0
      %s20 = sshll.u32 %s0, 4
      %s21 = int_to_ptr.hbm [resolvable:$true] %s20
      %s22 = sshll.u32 [#allocation2], 4
      %s23 = int_to_ptr.vmem [resolvable:$true] %s22
      %25 = dma.hbm_to_vmem [thread:$0]  %s21, 128, %s23, [#allocation3]
    $region5: #{tpu_custom_call.1} parent=1 // pred_fallthru
      _
    // Predicated region
    $region6: #{tpu_custom_call.1} parent=1 // pred_check
      _
    $region7: #{tpu_custom_call.1} parent=1 // pred_check_branch
      %27 = sbr.rel (0) target = $region9
    $region8: #{tpu_custom_call.1} parent=1 // pred_region
      %29 = vsyncadd [#allocation6], 0
      %s30 = sshll.u32 %s1, 4
      %s31 = int_to_ptr.hbm [resolvable:$true] %s30
      %s32 = sshll.u32 [#allocation5], 4
      %s33 = int_to_ptr.vmem [resolvable:$true] %s32
      %38 = dma.hbm_to_vmem [thread:$0]  %s31, 256, %s33, [#allocation6], 128, 128, 8
    $region9: #{tpu_custom_call.1} parent=1 // pred_fallthru
      _
    // Predicated region
    $region10: #{tpu_custom_call.1} parent=1 // pred_check
      _
    $region11: #{tpu_custom_call.1} parent=1 // pred_check_branch
      %40 = sbr.rel (0) target = $region13
    $region12: #{tpu_custom_call.1} parent=1 // pred_region
      %42 = vsyncadd [#allocation6], 0
      %s44 = sshll.u32 %s2, 4
      %s45 = int_to_ptr.hbm [resolvable:$true] %s44
      %s46 = sshll.u32 [#allocation7], 4
      %s47 = int_to_ptr.vmem [resolvable:$true] %s46
      %49 = dma.hbm_to_vmem [thread:$0]  %s45, 64, %s47, [#allocation6]
    $region13: #{tpu_custom_call.1} parent=1 // pred_fallthru
      _
    // Predicated region
    $region14: #{tpu_custom_call.1} parent=1 // pred_check
      _
    $region15: #{tpu_custom_call.1} parent=1 // pred_check_branch
      %51 = sbr.rel (0) target = $region17
    $region16: #{tpu_custom_call.1} parent=1 // pred_region
      %53 = vsyncadd [#allocation9], 0
      %s54 = sshll.u32 %s3, 4
      %s55 = int_to_ptr.hbm [resolvable:$true] %s54
      %s56 = sshll.u32 [#allocation8], 4
      %s57 = int_to_ptr.vmem [resolvable:$true] %s56
      %62 = dma.hbm_to_vmem [thread:$0]  %s55, 1024, %s57, [#allocation9], 128, 128, 8
    $region17: #{tpu_custom_call.1} parent=1 // pred_fallthru
      _
    // Predicated region
    $region18: #{tpu_custom_call.1} parent=1 // pred_check
      _
    $region19: #{tpu_custom_call.1} parent=1 // pred_check_branch
      %64 = sbr.rel (0) target = $region21
    $region20: #{tpu_custom_call.1} parent=1 // pred_region
      %66 = vsyncadd [#allocation9], 0
      %s67 = sshll.u32 %s4, 4
      %s68 = int_to_ptr.hbm [resolvable:$true] %s67
      %s69 = sshll.u32 [#allocation10], 4
      %s70 = int_to_ptr.vmem [resolvable:$true] %s69
      %75 = dma.hbm_to_vmem [thread:$0]  %s68, 512, %s70, [#allocation9], 128, 128, 8
    $region21: #{tpu_custom_call.1} parent=1 // pred_fallthru
      _
    // Predicated region
    $region22: #{tpu_custom_call.1} parent=1 // pred_check
      _
    $region23: #{tpu_custom_call.1} parent=1 // pred_check_branch
      %77 = sbr.rel (0) target = $region25
    $region24: #{tpu_custom_call.1} parent=1 // pred_region
      _
    $region25: #{tpu_custom_call.1} parent=1 // pred_fallthru
      _
    // Predicated region
    $region26: #{tpu_custom_call.1} parent=1 // pred_check
      _
    $region27: #{tpu_custom_call.1} parent=1 // pred_check_branch
      %79 = sbr.rel (0) target = $region29
    $region28: #{tpu_custom_call.1} parent=1 // pred_region
      %81 = dma.done [#allocation3], 128
    $region29: #{tpu_custom_call.1} parent=1 // pred_fallthru
      _
    // Predicated region
    $region30: #{tpu_custom_call.1} parent=1 // pred_check
      _
    $region31: #{tpu_custom_call.1} parent=1 // pred_check_branch
      %83 = sbr.rel (0) target = $region33
    $region32: #{tpu_custom_call.1} parent=1 // pred_region
      %85 = dma.done [#allocation6], 256
    $region33: #{tpu_custom_call.1} parent=1 // pred_fallthru
      _
    // Predicated region
    $region34: #{tpu_custom_call.1} parent=1 // pred_check
      _
    $region35: #{tpu_custom_call.1} parent=1 // pred_check_branch
      %87 = sbr.rel (0) target = $region37
    $region36: #{tpu_custom_call.1} parent=1 // pred_region
      %89 = dma.done [#allocation6], 64
    $region37: #{tpu_custom_call.1} parent=1 // pred_fallthru
      _
    // Predicated region
    $region38: #{tpu_custom_call.1} parent=1 // pred_check
      _
    $region39: #{tpu_custom_call.1} parent=1 // pred_check_branch
      %91 = sbr.rel (0) target = $region41
    $region40: #{tpu_custom_call.1} parent=1 // pred_region
      %93 = dma.done [#allocation9], 1024
    $region41: #{tpu_custom_call.1} parent=1 // pred_fallthru
      _
    // Predicated region
    $region42: #{tpu_custom_call.1} parent=1 // pred_check
      _
    $region43: #{tpu_custom_call.1} parent=1 // pred_check_branch
      %95 = sbr.rel (0) target = $region45
    $region44: #{tpu_custom_call.1} parent=1 // pred_region
      %97 = dma.done [#allocation9], 512
    $region45: #{tpu_custom_call.1} parent=1 // pred_fallthru
      _
    %v98 = vld [vmem:[#allocation2] sm:$0xff]
    %v99 = vld [vmem:[#allocation7] sm:$0x1]
    %v100 = vld [vmem:[#allocation7 + $0x1] sm:$0x1]
    %v101 = vld [vmem:[#allocation7 + $0x2] sm:$0x1]
    %v102 = vld [vmem:[#allocation5] sm:$0xff]
    %v103 = vld [vmem:[#allocation5 + $0x8] sm:$0xff]
    %v104 = vperm.slane %v99, 0
    %vm105 = vcmask 130048
    %v107 = vsel %vm105, %v98, 0
    %109 = vmatpush.msra.mxu0 0.0
    %110 = vmatpush.msra.mxu0 0.0
    %111 = vmatpush.msra.mxu0 0.0
    %112 = vmatpush.msra.mxu0 0.0
    %113 = vmatpush.msra.mxu0 0.0
    %114 = vmatpush.msra.mxu0 0.0
    %115 = vmatpush.msra.mxu0 0.0
    %116 = vmatpush.msra.mxu0 0.0
    %117 = vmatpush.msra.mxu0 0.0
    %118 = vmatpush.msra.mxu0 0.0
    %119 = vmatpush.msra.mxu0 0.0
    %120 = vmatpush.msra.mxu0 0.0
    %121 = vmatpush.msra.mxu0 0.0
    %122 = vmatpush.msra.mxu0 0.0
    %123 = vmatpush.msra.mxu0 %v103
    %124 = vmatpush.msra.mxu0 %v102
    %125 = vmatmul.f32.gmra.mxu0 %v107
    %v126 = vpop.f32.mrf.mxu0
    %v127 = vadd.f32 %v104, %v126
    %128 = vdwg.mxu0
    %v129 = vld [vmem:[#allocation8] sm:$0xff]
    %v130 = vld [vmem:[#allocation8 + $0x8] sm:$0xff]
    %v131 = vld [vmem:[#allocation8 + $0x10] sm:$0xff]
    %v132 = vld [vmem:[#allocation8 + $0x18] sm:$0xff]
    %vm133 = vcmask 261120
    %v135 = vsel %vm133, %v127, 0
    %137 = vmatpush.msra.mxu0 0.0
    %138 = vmatpush.msra.mxu0 0.0
    %139 = vmatpush.msra.mxu0 0.0
    %140 = vmatpush.msra.mxu0 0.0
    %141 = vmatpush.msra.mxu0 0.0
    %142 = vmatpush.msra.mxu0 0.0
    %143 = vmatpush.msra.mxu0 0.0
    %144 = vmatpush.msra.mxu0 0.0
    %145 = vmatpush.msra.mxu0 0.0
    %146 = vmatpush.msra.mxu0 0.0
    %147 = vmatpush.msra.mxu0 0.0
    %148 = vmatpush.msra.mxu0 0.0
    %149 = vmatpush.msra.mxu0 %v132
    %150 = vmatpush.msra.mxu0 %v131
    %151 = vmatpush.msra.mxu0 %v130
    %152 = vmatpush.msra.mxu0 %v129
    %153 = vmatmul.f32.gmra.mxu0 %v135
    %v154 = vpop.f32.mrf.mxu0
    %v155 = vadd.f32 0.0, %v154
    %156 = vdwg.mxu0
    %v157 = vxor.u32 %v155, 2147483648
    %v158 = vmul.f32 %v157, 1.442695
    %v159 = vpow.pop %v158
    %v160 = vadd.f32 %v159, 1.0
    %v161 = vrcp.pop %v160
    %v162 = vmul.f32 %v160, %v161
    %v163 = vsub.f32 1.0, %v162
    %v164 = vmul.f32 %v161, %v163
    %v165 = vadd.f32 %v161, %v164
    %vm166 = vweird.f32 %v160
    %vm167 = vweird.f32 %v161
    %vm168 = vmor %vm166, %vm167
    %v169 = vsel %vm168, %v161, %v165
    %v170 = vand.u32 2147483647, %v160
    %vm171 = vcmp.eq.f32.partialorder %v170, 8.507059e+37
    %v172 = vand.u32 %v160, 2147483648
    %v173 = vor.u32 1.1754944e-38, %v172
    %v174 = vsel %vm171, %v173, %v169
    %v175 = vmul.f32 1.0, %v174
    %177 = vrot.lane.b32.xlu0 %v155, 32
    %v178 = vpop.permute.xlu0 %177
    %v180 = vmul.f32 %v175, %v178
    %182 = vrot.lane.b32.xlu0 %v180, 96
    %v183 = vpop.permute.xlu0 %182
    %v185 = vadd.f32 %v127, %v183
    %v186 = vsel %vm133, %v185, 0.0
    %187 = vadd.xlane.f32.xlu0 %v186
    %v188 = vpop.xlane.xlu0 %187
    %v189 = vrcp.pop 32.0
    %v190 = vmul.f32 32.0, %v189
    %v191 = vsub.f32 1.0, %v190
    %v192 = vmul.f32 %v189, %v191
    %v193 = vadd.f32 %v189, %v192
    %vm194 = vweird.f32 %v189
    %v195 = vsel %vm194, %v189, %v193
    %v196 = vmul.f32 %v188, %v195
    %v197 = vsub.f32 %v185, %v196
    %v198 = vmul.f32 %v197, %v197
    %v199 = vsel %vm133, %v198, 0.0
    %200 = vadd.xlane.f32.xlu0 %v199
    %v201 = vpop.xlane.xlu0 %200
    %v202 = vmul.f32 %v201, %v195
    %v203 = vadd.f32 %v202, 1e-05
    %v204 = vrsqrt.pop %v203
    %v205 = vmul.f32 %v204, %v203
    %v206 = vmul.f32 %v205, %v204
    %v207 = vmul.f32 0.5, %v206
    %v208 = vsub.f32 1.5, %v207
    %v209 = vmul.f32 %v204, %v208
    %vm210 = vweird.f32 %v203
    %vm211 = vweird.f32 %v204
    %vm212 = vmor %vm210, %vm211
    %v213 = vsel %vm212, %v204, %v209
    %v214 = vmul.f32 %v197, %v213
    %v215 = vperm.slane %v100, 0
    %v216 = vmul.f32 %v214, %v215
    %v217 = vperm.slane %v101, 0
    %v218 = vadd.f32 %v216, %v217
    %s219 = scalar_lea.vmem [#allocation8], 32
    %v220 = vld [vmem:[%s219] sm:$0xff]
    %v221 = vld [vmem:[%s219 + $0x8] sm:$0xff]
    %v222 = vld [vmem:[%s219 + $0x10] sm:$0xff]
    %v223 = vld [vmem:[%s219 + $0x18] sm:$0xff]
    %v225 = vsel %vm133, %v218, 0
    %227 = vmatpush.msra.mxu0 0.0
    %228 = vmatpush.msra.mxu0 0.0
    %229 = vmatpush.msra.mxu0 0.0
    %230 = vmatpush.msra.mxu0 0.0
    %231 = vmatpush.msra.mxu0 0.0
    %232 = vmatpush.msra.mxu0 0.0
    %233 = vmatpush.msra.mxu0 0.0
    %234 = vmatpush.msra.mxu0 0.0
    %235 = vmatpush.msra.mxu0 0.0
    %236 = vmatpush.msra.mxu0 0.0
    %237 = vmatpush.msra.mxu0 0.0
    %238 = vmatpush.msra.mxu0 0.0
    %239 = vmatpush.msra.mxu0 %v223
    %240 = vmatpush.msra.mxu0 %v222
    %241 = vmatpush.msra.mxu0 %v221
    %242 = vmatpush.msra.mxu0 %v220
    %243 = vmatmul.f32.gmra.mxu0 %v225
    %v244 = vpop.f32.mrf.mxu0
    %v245 = vadd.f32 0.0, %v244
    %246 = vdwg.mxu0
    %v247 = vxor.u32 %v245, 2147483648
    %v248 = vmul.f32 %v247, 1.442695
    %v249 = vpow.pop %v248
    %v250 = vadd.f32 %v249, 1.0
    %v251 = vrcp.pop %v250
    %v252 = vmul.f32 %v250, %v251
    %v253 = vsub.f32 1.0, %v252
    %v254 = vmul.f32 %v251, %v253
    %v255 = vadd.f32 %v251, %v254
    %vm256 = vweird.f32 %v250
    %vm257 = vweird.f32 %v251
    %vm258 = vmor %vm256, %vm257
    %v259 = vsel %vm258, %v251, %v255
    %v260 = vand.u32 2147483647, %v250
    %vm261 = vcmp.eq.f32.partialorder %v260, 8.507059e+37
    %v262 = vand.u32 %v250, 2147483648
    %v263 = vor.u32 1.1754944e-38, %v262
    %v264 = vsel %vm261, %v263, %v259
    %v265 = vmul.f32 1.0, %v264
    %267 = vrot.lane.b32.xlu0 %v245, 32
    %v268 = vpop.permute.xlu0 %267
    %v270 = vmul.f32 %v265, %v268
    %272 = vrot.lane.b32.xlu0 %v270, 96
    %v273 = vpop.permute.xlu0 %272
    %v275 = vadd.f32 %v218, %v273
    %v276 = vsel %vm133, %v275, 0.0
    %277 = vadd.xlane.f32.xlu0 %v276
    %v278 = vpop.xlane.xlu0 %277
    %v279 = vmul.f32 %v278, %v195
    %v280 = vsub.f32 %v275, %v279
    %v281 = vmul.f32 %v280, %v280
    %v282 = vsel %vm133, %v281, 0.0
    %283 = vadd.xlane.f32.xlu0 %v282
    %v284 = vpop.xlane.xlu0 %283
    %v285 = vmul.f32 %v284, %v195
    %v286 = vadd.f32 %v285, 1e-05
    %v287 = vrsqrt.pop %v286
    %v288 = vmul.f32 %v287, %v286
    %v289 = vmul.f32 %v288, %v287
    %v290 = vmul.f32 0.5, %v289
    %v291 = vsub.f32 1.5, %v290
    %v292 = vmul.f32 %v287, %v291
    %vm293 = vweird.f32 %v286
    %vm294 = vweird.f32 %v287
    %vm295 = vmor %vm293, %vm294
    %v296 = vsel %vm295, %v287, %v292
    %v297 = vmul.f32 %v280, %v296
    %v298 = vmul.f32 %v297, %v215
    %v299 = vadd.f32 %v298, %v217
    %v300 = vld [vmem:[#allocation10] sm:$0xff]
    %v301 = vld [vmem:[#allocation10 + $0x8] sm:$0xff]
    %v302 = vld [vmem:[#allocation10 + $0x10] sm:$0xff]
    %v303 = vld [vmem:[#allocation10 + $0x18] sm:$0xff]
    %v304 = vld [vmem:[%s5] sm:$0x1]
    %v306 = vperm.slane %v304, 0
    %v309 = vsel %vm133, %v299, 0
    %311 = vmatpush.msra.mxu0 0.0
    %312 = vmatpush.msra.mxu0 0.0
    %313 = vmatpush.msra.mxu0 0.0
    %314 = vmatpush.msra.mxu0 0.0
    %315 = vmatpush.msra.mxu0 0.0
    %316 = vmatpush.msra.mxu0 0.0
    %317 = vmatpush.msra.mxu0 0.0
    %318 = vmatpush.msra.mxu0 0.0
    %319 = vmatpush.msra.mxu0 0.0
    %320 = vmatpush.msra.mxu0 0.0
    %321 = vmatpush.msra.mxu0 0.0
    %322 = vmatpush.msra.mxu0 0.0
    %323 = vmatpush.msra.mxu0 %v303
    %324 = vmatpush.msra.mxu0 %v302
    %325 = vmatpush.msra.mxu0 %v301
    %326 = vmatpush.msra.mxu0 %v300
    %327 = vmatmul.f32.gmra.mxu0 %v309
    %v328 = vpop.f32.mrf.mxu0
    %v329 = vadd.f32 %v306, %v328
    %330 = vdwg.mxu0
    %331 = vst [vmem:[#allocation11] sm:$0xff] %v329
    // Predicated region
    $region46: #{tpu_custom_call.1} parent=1 // pred_check
      _
    $region47: #{tpu_custom_call.1} parent=1 // pred_check_branch
      %333 = sbr.rel (0) target = $region49
    $region48: #{tpu_custom_call.1} parent=1 // pred_region
      %335 = vsyncadd [#allocation4], 0
      %s337 = sshll.u32 [#allocation11], 4
      %s338 = int_to_ptr.vmem [resolvable:$true] %s337
      %s339 = sshll.u32 %s6, 4
      %s340 = int_to_ptr.hbm [resolvable:$true] %s339
      %342 = dma.vmem_to_hbm [thread:$0]  %s338, 128, %s340, [#allocation4]
    $region49: #{tpu_custom_call.1} parent=1 // pred_fallthru
      _
    // Predicated region
    $region50: #{tpu_custom_call.1} parent=1 // pred_check
      _
    $region51: #{tpu_custom_call.1} parent=1 // pred_check_branch
      %344 = sbr.rel (0) target = $region53
    $region52: #{tpu_custom_call.1} parent=1 // pred_region
      %346 = dma.done [#allocation4], 128
    $region53: #{tpu_custom_call.1} parent=1 // pred_fallthru
      _
    %347 = vsyncpa [#allocation3], 1
    %348 = vsyncpa [#allocation6], 1
    %349 = vsyncpa [#allocation9], 1
    %350 = vsyncpa [#allocation4], 1

</llo_original>
